<compile_context>
chip_gen: v6e
topology: v6e:2x2x1
jax: 0.10.0
libtpu: 0.0.40
codegen_flags: <defaults>
</compile_context>

<pallas_src>
import functools
import math

import jax
import jax.numpy as jnp
from jax.experimental import pallas as pl
from jax.experimental.pallas import tpu as pltpu

SMEM = pltpu.MemorySpace.SMEM
VMEM = pltpu.MemorySpace.VMEM
LN_EPS = 1e-12  # BERT LayerNorm eps


# ----------------------------------------------------------------------------
# Generation-aware sizing
# ----------------------------------------------------------------------------
def _vmem_limit_bytes(default=64 << 20):
    """~3/4 of per-core VMEM (v5e/v6e: ~96 MiB, v7x: ~48 MiB)."""
    cap = None
    try:
        info = pltpu.get_tpu_info()
        for name in ("vmem_capacity_bytes", "vmem_size_bytes", "vmem_bytes"):
            cap = getattr(info, name, None)
            if cap:
                break
    except Exception:
        cap = None
    if not cap:
        cap = default
    return min(int(cap) * 3 // 4, 112 << 20)


VMEM_LIMIT = _vmem_limit_bytes()
# Larger row blocks on 128 MiB-VMEM parts (fewer weight re-streams on v5e/v6e's
# slower HBM); conservative on v7x (64 MiB/TC, compute-bound anyway).
ROW_TILE_TARGET = 2048 if VMEM_LIMIT >= (80 << 20) else 512


def _gelu(x):
    # TODO(synk): tanh approximation of GELU (HF BERT default is exact erf).
    c = math.sqrt(2.0 / math.pi)
    return 0.5 * x * (1.0 + jnp.tanh(c * (x + 0.044715 * x * x * x)))


def _pick_tile(dim, target, align):
    """Largest tile <= target that divides dim and is a multiple of align.

    If dim <= target the full dim is used (block == array dim is always legal).
    # TODO(synk): on v7x prefer tiles giving an even number of row blocks so
    # both TensorCores stay busy.
    """
    if dim <= target:
        return dim
    t = (target // align) * align
    while t >= align:
        if dim % t == 0:
            return t
        t -= align
    return dim


# ----------------------------------------------------------------------------
# Kernels
# ----------------------------------------------------------------------------
def matmul_bias_kernel(x_ref, w_ref, b_ref, o_ref):
    """y = x @ w + b.  Weight-stationary, full-K/full-N; grid over row blocks."""
    o_ref[...] = (jnp.dot(x_ref[...], w_ref[...],
                          preferred_element_type=jnp.float32)
                  + b_ref[...]).astype(o_ref.dtype)


def fused_linear_res_ln_kernel(qp_ref, x_ref, w_ref, b_ref, res_ref,
                               g_ref, bt_ref, o_ref,
                               *, x_quant, pre_gelu, res_quant):
    """y = LayerNorm((maybe GELU(dequant(x))) @ w + b + dequant(res)).

    Full-K contraction (no k axis, no accumulator); LN epilogue sees full rows.
    qp = [x_scale, x_zp, r_scale, r_zp] lives in SMEM.
    """
    x = x_ref[...]
    if x_quant:
        x = (x.astype(jnp.float32) - qp_ref[1]) * qp_ref[0]
    if pre_gelu:
        x = _gelu(x.astype(jnp.float32))
    x = x.astype(w_ref.dtype)  # bf16 onto the MXU
    y = jnp.dot(x, w_ref[...], preferred_element_type=jnp.float32) + b_ref[...]

    r = res_ref[...].astype(jnp.float32)
    if res_quant:
        r = (r - qp_ref[3]) * qp_ref[2]
    y = y + r

    mean = jnp.mean(y, axis=-1, keepdims=True)
    yc = y - mean
    var = jnp.mean(yc * yc, axis=-1, keepdims=True)
    o_ref[...] = (yc * jax.lax.rsqrt(var + LN_EPS) * g_ref[...]
                  + bt_ref[...]).astype(o_ref.dtype)


def fused_ffn_ln_kernel(x_ref, w1_ref, b1_ref, w2_ref, b2_ref,
                        g_ref, bt_ref, o_ref):
    """Whole FFN block in one kernel:
        y = LayerNorm(GELU(x @ W1 + b1) @ W2 + b2 + x)
    The [tm, I] intermediate never leaves VMEM; x doubles as the residual.
    """
    x = x_ref[...]
    inter = _gelu(jnp.dot(x, w1_ref[...], preferred_element_type=jnp.float32)
                  + b1_ref[...])
    y = (jnp.dot(inter.astype(w2_ref.dtype), w2_ref[...],
                 preferred_element_type=jnp.float32)
         + b2_ref[...] + x.astype(jnp.float32))
    mean = jnp.mean(y, axis=-1, keepdims=True)
    yc = y - mean
    var = jnp.mean(yc * yc, axis=-1, keepdims=True)
    o_ref[...] = (yc * jax.lax.rsqrt(var + LN_EPS) * g_ref[...]
                  + bt_ref[...]).astype(o_ref.dtype)


def attn_heads_kernel(qkv_ref, m_ref, o_ref, ctx_ref, *, nh, d, scale):
    """Self-attention for one batch element (all heads).

    qkv_ref block: [1, S, 3H] (Q|K|V).  The K slab is transposed once per grid
    step (f32 XLU transpose) so per-head score matmuls are plain [S,d]@[d,S]
    MXU ops with no per-head relayout.  Head contexts are written straight
    into an [S, H] VMEM scratch, then stored lane-dense in one go.
    """
    qkv = qkv_ref[0]                       # [S, 3H] bf16
    mask = m_ref[0]                        # [1, S]  additive mask (f32)
    hdim = nh * d
    kt = jnp.transpose(
        qkv[:, hdim:2 * hdim].astype(jnp.float32)).astype(qkv.dtype)  # [H, S]

    for h in range(nh):  # TODO(synk): flash-style kv tiling + fori_loop for big S/NH
        q = qkv[:, h * d:(h + 1) * d]
        v = qkv[:, 2 * hdim + h * d:2 * hdim + (h + 1) * d]
        s = jnp.dot(q, kt[h * d:(h + 1) * d, :],
                    preferred_element_type=jnp.float32) * scale + mask
        s = s - jnp.max(s, axis=-1, keepdims=True)
        p = jnp.exp(s)
        p = p / jnp.sum(p, axis=-1, keepdims=True)
        ctx_ref[:, h * d:(h + 1) * d] = jnp.dot(
            p.astype(qkv.dtype), v, preferred_element_type=jnp.float32)

    o_ref[0] = ctx_ref[...].astype(o_ref.dtype)


def pooler_fc_kernel(cls_ref, wp_ref, bp_ref, wf_ref, bf_ref, o_ref):
    """Fused pooler (dense + tanh) + classification head on the [CLS] token."""
    x = cls_ref[...]
    pooled = jnp.tanh(jnp.dot(x, wp_ref[...],
                              preferred_element_type=jnp.float32) + bp_ref[...])
    o_ref[...] = (jnp.dot(pooled.astype(wf_ref.dtype), wf_ref[...],
                          preferred_element_type=jnp.float32) + bf_ref[...])


# ----------------------------------------------------------------------------
# Pallas wrappers
# ----------------------------------------------------------------------------
def qkv_projection(x, w, b, tm=None):
    M, K = x.shape
    _, N = w.shape
    tm = _pick_tile(M, tm or ROW_TILE_TARGET, 16)
    return pl.pallas_call(
        matmul_bias_kernel,
        out_shape=jax.ShapeDtypeStruct((M, N), jnp.bfloat16),
        grid=(M // tm,),
        in_specs=[pl.BlockSpec((tm, K), lambda i: (i, 0)),
                  pl.BlockSpec((K, N), lambda i: (0, 0)),
                  pl.BlockSpec((1, N), lambda i: (0, 0))],
        out_specs=pl.BlockSpec((tm, N), lambda i: (i, 0)),
        compiler_params=pltpu.CompilerParams(
            dimension_semantics=("parallel",),
            vmem_limit_bytes=VMEM_LIMIT),
    )(x, w, b)


def fused_linear_res_ln(x, w, b, res, gamma, beta, qparams,
                        x_quant=False, pre_gelu=False, res_quant=False, tm=None):
    M, K = x.shape
    _, N = w.shape
    align = 32 if x.dtype == jnp.int8 else 16   # packed-sublane granule
    tm = _pick_tile(M, tm or ROW_TILE_TARGET, align)
    return pl.pallas_call(
        functools.partial(fused_linear_res_ln_kernel, x_quant=x_quant,
                          pre_gelu=pre_gelu, res_quant=res_quant),
        out_shape=jax.ShapeDtypeStruct((M, N), jnp.bfloat16),
        grid=(M // tm,),
        in_specs=[pl.BlockSpec(memory_space=SMEM),                # qparams (4,)
                  pl.BlockSpec((tm, K), lambda i: (i, 0)),        # x
                  pl.BlockSpec((K, N), lambda i: (0, 0)),         # w (stationary)
                  pl.BlockSpec((1, N), lambda i: (0, 0)),         # bias
                  pl.BlockSpec((tm, N), lambda i: (i, 0)),        # residual
                  pl.BlockSpec((1, N), lambda i: (0, 0)),         # ln gamma
                  pl.BlockSpec((1, N), lambda i: (0, 0))],        # ln beta
        out_specs=pl.BlockSpec((tm, N), lambda i: (i, 0)),
        compiler_params=pltpu.CompilerParams(
            dimension_semantics=("parallel",),
            vmem_limit_bytes=VMEM_LIMIT),
    )(qparams, x, w, b, res, gamma, beta)


def fused_ffn_ln(x, w1, b1, w2, b2, gamma, beta, tm=None):
    M, H = x.shape
    I = w1.shape[1]
    # Bound tm so the f32 [tm, I] intermediate stays modest even on v5e/v6e.
    tm = _pick_tile(M, tm or min(ROW_TILE_TARGET, 1024), 16)
    return pl.pallas_call(
        fused_ffn_ln_kernel,
        out_shape=jax.ShapeDtypeStruct((M, H), jnp.bfloat16),
        grid=(M // tm,),
        in_specs=[pl.BlockSpec((tm, H), lambda i: (i, 0)),        # x (also residual)
                  pl.BlockSpec((H, I), lambda i: (0, 0)),         # W1 (stationary)
                  pl.BlockSpec((1, I), lambda i: (0, 0)),         # b1
                  pl.BlockSpec((I, H), lambda i: (0, 0)),         # W2 (stationary)
                  pl.BlockSpec((1, H), lambda i: (0, 0)),         # b2
                  pl.BlockSpec((1, H), lambda i: (0, 0)),         # ln gamma
                  pl.BlockSpec((1, H), lambda i: (0, 0))],        # ln beta
        out_specs=pl.BlockSpec((tm, H), lambda i: (i, 0)),
        compiler_params=pltpu.CompilerParams(
            dimension_semantics=("parallel",),
            vmem_limit_bytes=VMEM_LIMIT),
    )(x, w1, b1, w2, b2, gamma, beta)


def mha_attention(qkv3, mask3, B, S, NH, D):
    H = NH * D
    return pl.pallas_call(
        functools.partial(attn_heads_kernel, nh=NH, d=D,
                          scale=1.0 / math.sqrt(D)),
        out_shape=jax.ShapeDtypeStruct((B, S, H), jnp.bfloat16),
        grid=(B,),
        in_specs=[pl.BlockSpec((1, S, 3 * H), lambda b: (b, 0, 0)),
                  pl.BlockSpec((1, 1, S), lambda b: (b, 0, 0))],
        out_specs=pl.BlockSpec((1, S, H), lambda b: (b, 0, 0)),
        scratch_shapes=[pltpu.VMEM((S, H), jnp.float32)],
        compiler_params=pltpu.CompilerParams(
            dimension_semantics=("parallel",),
            vmem_limit_bytes=VMEM_LIMIT),
    )(qkv3, mask3)


def pooler_fc(cls, wp, bp, wf, bf):
    B, _ = cls.shape
    L = wf.shape[1]
    return pl.pallas_call(
        pooler_fc_kernel,
        out_shape=jax.ShapeDtypeStruct((B, L), jnp.float32),
        in_specs=[pl.BlockSpec(memory_space=VMEM)] * 5,
        out_specs=pl.BlockSpec(memory_space=VMEM),
    )(cls, wp, bp, wf, bf)


# ----------------------------------------------------------------------------
# Model glue (reshapes / parameter plumbing stay in plain JAX)
# ----------------------------------------------------------------------------
def bert_layer(x2, mask3, ones_qp, lp, B, S, NH, D):
    H = NH * D
    M = B * S
    # fused QKV projection: one [M,H] x [H,3H] matmul
    qkv = qkv_projection(x2, lp["wqkv"], lp["bqkv"])
    ctx = mha_attention(qkv.reshape(B, S, 3 * H), mask3, B, S, NH, D)
    ctx2 = ctx.reshape(M, H)
    # attention.output.dense + residual + LayerNorm (fused)
    h1 = fused_linear_res_ln(ctx2, lp["wo"], lp["bo"], x2,
                             lp["ln1_g"], lp["ln1_b"], ones_qp)
    # whole FFN block (intermediate dense + GELU + output dense + residual + LN)
    h2 = fused_ffn_ln(h1, lp["wi"], lp["bi"], lp["wo2"], lp["bo2"],
                      lp["ln2_g"], lp["ln2_b"])
    return h2


def bert_back_ffn_quant_res_forward(params, ffn_q, ffn_scale, ffn_zp,
                                    res_q, res_scale, res_zp, attention_mask):
    B, S, I = ffn_q.shape
    H = res_q.shape[-1]
    NH = params["num_heads"]
    D = H // NH
    M = B * S

    qparams = jnp.concatenate(
        [ffn_scale, ffn_zp, res_scale, res_zp]).astype(jnp.float32)
    ones_qp = jnp.array([1.0, 0.0, 1.0, 0.0], jnp.float32)

    # Split-layer tail, one kernel:
    #   dequant(ffn) -> GELU -> output.dense -> (+dequant(residual)) -> LayerNorm
    h = fused_linear_res_ln(
        ffn_q.reshape(M, I), params["split_out_w"], params["split_out_b"],
        res_q.reshape(M, H), params["split_ln_g"], params["split_ln_b"],
        qparams, x_quant=True, pre_gelu=True, res_quant=True)

    # extended attention mask: (1 - mask)[:, None, None, :] * -10000 (per batch)
    if attention_mask is None:
        mask3 = jnp.zeros((B, 1, S), jnp.float32)
    else:
        mask3 = ((1.0 - attention_mask.astype(jnp.float32)) * -10000.0)[:, None, :]

    for lp in params["layers"]:
        h = bert_layer(h, mask3, ones_qp, lp, B, S, NH, D)

    hidden = h.reshape(B, S, H)
    cls = hidden[:, 0, :]
    # pooler (dense+tanh) + dropout(identity) + classification head, fused
    return pooler_fc(cls, params["pooler_w"], params["pooler_b"],
                     params["fc_w"], params["fc_b"])


def init_params(key, H, I, NH, num_layers, label_nums):
    keys = iter(jax.random.split(key, 64))

    def lin(in_f, out_f):
        w = (jax.random.normal(next(keys), (in_f, out_f), jnp.float32)
             * 0.02).astype(jnp.bfloat16)       # weights live in bf16
        b = jnp.zeros((1, out_f), jnp.float32)  # biases / LN params in f32
        return w, b

    params = {"num_heads": NH}
    params["split_out_w"], params["split_out_b"] = lin(I, H)
    params["split_ln_g"] = jnp.ones((1, H), jnp.float32)
    params["split_ln_b"] = jnp.zeros((1, H), jnp.float32)

    layers = []
    for _ in range(num_layers):
        lp = {}
        wq, bq = lin(H, H)
        wk, bk = lin(H, H)
        wv, bv = lin(H, H)
        lp["wqkv"] = jnp.concatenate([wq, wk, wv], axis=1)   # [H, 3H]
        lp["bqkv"] = jnp.concatenate([bq, bk, bv], axis=1)   # [1, 3H]
        lp["wo"], lp["bo"] = lin(H, H)
        lp["ln1_g"] = jnp.ones((1, H), jnp.float32)
        lp["ln1_b"] = jnp.zeros((1, H), jnp.float32)
        lp["wi"], lp["bi"] = lin(H, I)
        lp["wo2"], lp["bo2"] = lin(I, H)
        lp["ln2_g"] = jnp.ones((1, H), jnp.float32)
        lp["ln2_b"] = jnp.zeros((1, H), jnp.float32)
        layers.append(lp)
    params["layers"] = layers

    params["pooler_w"], params["pooler_b"] = lin(H, H)
    params["fc_w"], params["fc_b"] = lin(H, label_nums)
    return params


if __name__ == "__main__":
    # Small shapes consistent with the module: hidden=32, intermediate=2*H,
    # 4 heads, 2 remaining encoder layers, 3 labels.
    B, S, H, I, NH, LABELS, NUM_LAYERS = 2, 8, 32, 64, 4, 3, 2

    key = jax.random.PRNGKey(0)
    kp, k1, k2 = jax.random.split(key, 3)
    params = init_params(kp, H, I, NH, NUM_LAYERS, LABELS)

    # Simulated quantized inputs (kept as int8, dequantized inside the kernel).
    ffn_q = jax.random.randint(k1, (B, S, I), -128, 128, jnp.int32).astype(jnp.int8)
    res_q = jax.random.randint(k2, (B, S, H), -128, 128, jnp.int32).astype(jnp.int8)
    ffn_scale = jnp.array([0.02], jnp.float32)
    ffn_zp = jnp.array([0.0], jnp.float32)
    res_scale = jnp.array([0.01], jnp.float32)
    res_zp = jnp.array([0.0], jnp.float32)
    attention_mask = jnp.ones((B, S), jnp.float32)

    prediction = bert_back_ffn_quant_res_forward(
        params, ffn_q, ffn_scale, ffn_zp, res_q, res_scale, res_zp, attention_mask)
    jax.block_until_ready(prediction)
    assert prediction.shape == (B, LABELS)
    print("KERNEL_OK")
</pallas_src>

<mosaic_0001>
module attributes {stable_mosaic.version = 11 : i64} {
  func.func @fused_linear_res_ln_kernel(%arg0: i32, %arg1: memref<4xf32, #tpu.memory_space<smem>>, %arg2: memref<16x64xi8, #tpu.memory_space<vmem>>, %arg3: memref<64x32xbf16, #tpu.memory_space<vmem>>, %arg4: memref<1x32xf32, #tpu.memory_space<vmem>>, %arg5: memref<16x32xi8, #tpu.memory_space<vmem>>, %arg6: memref<1x32xf32, #tpu.memory_space<vmem>>, %arg7: memref<1x32xf32, #tpu.memory_space<vmem>>, %arg8: memref<16x32xbf16, #tpu.memory_space<vmem>>) attributes {dimension_semantics = [#tpu.dimension_semantics<parallel>], iteration_bounds = array<i64: 1>, scalar_prefetch = 0 : i64, scratch_operands = 0 : i64, tpu.core_type = #tpu.core_type<tc>, window_params = [{transform_indices = @transform_0, window_bounds = array<i64: 4>}, {transform_indices = @transform_1, window_bounds = array<i64: 16, 64>}, {pipeline_mode = #tpu.pipeline_mode<synchronous>, transform_indices = @transform_2, window_bounds = array<i64: 64, 32>}, {pipeline_mode = #tpu.pipeline_mode<synchronous>, transform_indices = @transform_3, window_bounds = array<i64: 1, 32>}, {transform_indices = @transform_4, window_bounds = array<i64: 16, 32>}, {pipeline_mode = #tpu.pipeline_mode<synchronous>, transform_indices = @transform_5, window_bounds = array<i64: 1, 32>}, {pipeline_mode = #tpu.pipeline_mode<synchronous>, transform_indices = @transform_6, window_bounds = array<i64: 1, 32>}, {transform_indices = @transform_7, window_bounds = array<i64: 16, 32>}]} {
    %c0 = arith.constant 0 : index
    %c0_0 = arith.constant 0 : index
    %0 = vector.load %arg2[%c0, %c0_0] : memref<16x64xi8, #tpu.memory_space<vmem>>, vector<16x64xi8>
    %1 = arith.sitofp %0 : vector<16x64xi8> to vector<16x64xf32>
    %c1 = arith.constant 1 : index
    %2 = memref.load %arg1[%c1] : memref<4xf32, #tpu.memory_space<smem>>
    %3 = vector.broadcast %2 : f32 to vector<16x64xf32>
    %4 = arith.subf %1, %3 : vector<16x64xf32>
    %c0_1 = arith.constant 0 : index
    %5 = memref.load %arg1[%c0_1] : memref<4xf32, #tpu.memory_space<smem>>
    %6 = vector.broadcast %5 : f32 to vector<16x64xf32>
    %7 = arith.mulf %4, %6 : vector<16x64xf32>
    %cst = arith.constant 5.000000e-01 : f32
    %8 = vector.broadcast %cst : f32 to vector<16x64xf32>
    %9 = arith.mulf %8, %7 : vector<16x64xf32>
    %cst_2 = arith.constant 4.471500e-02 : f32
    %10 = vector.broadcast %cst_2 : f32 to vector<16x64xf32>
    %11 = arith.mulf %10, %7 : vector<16x64xf32>
    %12 = arith.mulf %11, %7 : vector<16x64xf32>
    %13 = arith.mulf %12, %7 : vector<16x64xf32>
    %14 = arith.addf %7, %13 : vector<16x64xf32>
    %cst_3 = arith.constant 0.797884583 : f32
    %15 = vector.broadcast %cst_3 : f32 to vector<16x64xf32>
    %16 = arith.mulf %15, %14 : vector<16x64xf32>
    %17 = math.tanh %16 : vector<16x64xf32>
    %cst_4 = arith.constant 1.000000e+00 : f32
    %18 = vector.broadcast %cst_4 : f32 to vector<16x64xf32>
    %19 = arith.addf %18, %17 : vector<16x64xf32>
    %20 = arith.mulf %9, %19 : vector<16x64xf32>
    %21 = arith.truncf %20 : vector<16x64xf32> to vector<16x64xbf16>
    %c0_5 = arith.constant 0 : index
    %c0_6 = arith.constant 0 : index
    %22 = vector.load %arg3[%c0_5, %c0_6] : memref<64x32xbf16, #tpu.memory_space<vmem>>, vector<64x32xbf16>
    %cst_7 = arith.constant dense<0.000000e+00> : vector<16x32xf32>
    %23 = tpu.matmul %21, %22, %cst_7 {dimension_numbers = #tpu.dot_dimension_numbers<[1], [0], [0], [1], [0, 0, 1, 1], [], []>} : vector<16x64xbf16>, vector<64x32xbf16>, vector<16x32xf32> -> vector<16x32xf32>
    %c0_8 = arith.constant 0 : index
    %c0_9 = arith.constant 0 : index
    %24 = vector.load %arg4[%c0_8, %c0_9] : memref<1x32xf32, #tpu.memory_space<vmem>>, vector<1x32xf32>
    %25 = vector.broadcast %24 : vector<1x32xf32> to vector<16x32xf32>
    %26 = arith.addf %23, %25 : vector<16x32xf32>
    %c0_10 = arith.constant 0 : index
    %c0_11 = arith.constant 0 : index
    %27 = vector.load %arg5[%c0_10, %c0_11] : memref<16x32xi8, #tpu.memory_space<vmem>>, vector<16x32xi8>
    %28 = arith.sitofp %27 : vector<16x32xi8> to vector<16x32xf32>
    %c3 = arith.constant 3 : index
    %29 = memref.load %arg1[%c3] : memref<4xf32, #tpu.memory_space<smem>>
    %30 = vector.broadcast %29 : f32 to vector<16x32xf32>
    %31 = arith.subf %28, %30 : vector<16x32xf32>
    %c2 = arith.constant 2 : index
    %32 = memref.load %arg1[%c2] : memref<4xf32, #tpu.memory_space<smem>>
    %33 = vector.broadcast %32 : f32 to vector<16x32xf32>
    %34 = arith.mulf %31, %33 : vector<16x32xf32>
    %35 = arith.addf %26, %34 : vector<16x32xf32>
    %cst_12 = arith.constant dense<0.000000e+00> : vector<16xf32>
    %36 = vector.multi_reduction <add>, %35, %cst_12 [1] : vector<16x32xf32> to vector<16xf32>
    %37 = vector.shape_cast %36 : vector<16xf32> to vector<16x1xf32>
    %cst_13 = arith.constant 3.200000e+01 : f32
    %38 = vector.broadcast %cst_13 : f32 to vector<16x1xf32>
    %39 = arith.divf %37, %38 : vector<16x1xf32>
    %40 = vector.broadcast %39 : vector<16x1xf32> to vector<16x32xf32>
    %41 = arith.subf %35, %40 : vector<16x32xf32>
    %42 = arith.mulf %41, %41 : vector<16x32xf32>
    %cst_14 = arith.constant dense<0.000000e+00> : vector<16xf32>
    %43 = vector.multi_reduction <add>, %42, %cst_14 [1] : vector<16x32xf32> to vector<16xf32>
    %44 = vector.shape_cast %43 : vector<16xf32> to vector<16x1xf32>
    %cst_15 = arith.constant 3.200000e+01 : f32
    %45 = vector.broadcast %cst_15 : f32 to vector<16x1xf32>
    %46 = arith.divf %44, %45 : vector<16x1xf32>
    %cst_16 = arith.constant 9.99999996E-13 : f32
    %47 = vector.broadcast %cst_16 : f32 to vector<16x1xf32>
    %48 = arith.addf %46, %47 : vector<16x1xf32>
    %49 = math.rsqrt %48 : vector<16x1xf32>
    %50 = vector.broadcast %49 : vector<16x1xf32> to vector<16x32xf32>
    %51 = arith.mulf %41, %50 : vector<16x32xf32>
    %c0_17 = arith.constant 0 : index
    %c0_18 = arith.constant 0 : index
    %52 = vector.load %arg6[%c0_17, %c0_18] : memref<1x32xf32, #tpu.memory_space<vmem>>, vector<1x32xf32>
    %53 = vector.broadcast %52 : vector<1x32xf32> to vector<16x32xf32>
    %54 = arith.mulf %51, %53 : vector<16x32xf32>
    %c0_19 = arith.constant 0 : index
    %c0_20 = arith.constant 0 : index
    %55 = vector.load %arg7[%c0_19, %c0_20] : memref<1x32xf32, #tpu.memory_space<vmem>>, vector<1x32xf32>
    %56 = vector.broadcast %55 : vector<1x32xf32> to vector<16x32xf32>
    %57 = arith.addf %54, %56 : vector<16x32xf32>
    %58 = arith.truncf %57 : vector<16x32xf32> to vector<16x32xbf16>
    %c0_21 = arith.constant 0 : index
    %c0_22 = arith.constant 0 : index
    %59 = vector.load %arg8[%c0_21, %c0_22] : memref<16x32xbf16, #tpu.memory_space<vmem>>, vector<16x32xbf16>
    tpu.vector_store %arg8[%c0_21, %c0_22], %58 {strides = array<i32>} : memref<16x32xbf16, #tpu.memory_space<vmem>>, vector<16x32xbf16>,
    return
  }
  func.func @transform_0(%arg0: i32) -> i32 {
    %c0_i32 = arith.constant 0 : i32
    %c0_i32_0 = arith.constant 0 : i32
    return %c0_i32 : i32
  }
  func.func @transform_1(%arg0: i32) -> (i32, i32) {
    %c0_i32 = arith.constant 0 : i32
    %c0_i32_0 = arith.constant 0 : i32
    return %arg0, %c0_i32 : i32, i32
  }
  func.func @transform_2(%arg0: i32) -> (i32, i32) {
    %c0_i32 = arith.constant 0 : i32
    %c0_i32_0 = arith.constant 0 : i32
    %c0_i32_1 = arith.constant 0 : i32
    return %c0_i32, %c0_i32_0 : i32, i32
  }
  func.func @transform_3(%arg0: i32) -> (i32, i32) {
    %c0_i32 = arith.constant 0 : i32
    %c0_i32_0 = arith.constant 0 : i32
    %c0_i32_1 = arith.constant 0 : i32
    return %c0_i32, %c0_i32_0 : i32, i32
  }
  func.func @transform_4(%arg0: i32) -> (i32, i32) {
    %c0_i32 = arith.constant 0 : i32
    %c0_i32_0 = arith.constant 0 : i32
    return %arg0, %c0_i32 : i32, i32
  }
  func.func @transform_5(%arg0: i32) -> (i32, i32) {
    %c0_i32 = arith.constant 0 : i32
    %c0_i32_0 = arith.constant 0 : i32
    %c0_i32_1 = arith.constant 0 : i32
    return %c0_i32, %c0_i32_0 : i32, i32
  }
  func.func @transform_6(%arg0: i32) -> (i32, i32) {
    %c0_i32 = arith.constant 0 : i32
    %c0_i32_0 = arith.constant 0 : i32
    %c0_i32_1 = arith.constant 0 : i32
    return %c0_i32, %c0_i32_0 : i32, i32
  }
  func.func @transform_7(%arg0: i32) -> (i32, i32) {
    %c0_i32 = arith.constant 0 : i32
    %c0_i32_0 = arith.constant 0 : i32
    return %arg0, %c0_i32 : i32, i32
  }
}

</mosaic_0001>

<llo_original>
// kernel: tpu_custom_call.1
$region0: #{tpu_custom_call.1}
  #allocation0 [shape = 'u32[]', space=smem, size = 0x4, offset = 0x4, fixed_abs, tag = 'smem constant byte address 0x4 - core index']
  #allocation1 [shape = 'u32[144,128]{1,0:T(1,128)}', space=vmem, size = 0x12000, scoped, tag = 'internal scratch']
  %s0 = inlined_call_operand.vmem [shape: f32[4], index: 0, kind: input, shape index: {}]
  %s1 = inlined_call_operand.vmem [shape: s8[16,64], index: 1, kind: input, shape index: {}]
  %s2 = inlined_call_operand.vmem [shape: bf16[64,32], index: 2, kind: input, shape index: {}]
  %s3 = inlined_call_operand.vmem [shape: f32[1,32], index: 3, kind: input, shape index: {}]
  %s4 = inlined_call_operand.vmem [shape: s8[16,32], index: 4, kind: input, shape index: {}]
  %s5 = inlined_call_operand.vmem [shape: f32[1,32], index: 5, kind: input, shape index: {}]
  %s6 = inlined_call_operand.vmem [shape: f32[1,32], index: 6, kind: input, shape index: {}]
  %s7 = inlined_call_operand.hbm [shape: bf16[16,32], index: 7, kind: output, shape index: {}]
  %s8 = sld [smem:[#allocation0]]
  $region42: #{tpu_custom_call.1} parent=0
    _
  %s10 = ssub.s32 1, %s8
  %s11 = scalar_select 0, %s10, %s8
  $region1: #{tpu_custom_call.1} parent=0
    #allocation2 [shape = 'u8[512]{0}', space=smem, size = 0x200, scoped, tag = 'input window, operand 0, single buffered']
    #allocation3 [shape = 's32[1]{0}', space=sflag, size = 0x4, scoped, tag = 'scoped memory for tpu_custom_call.1']
    #allocation4 [shape = 's32[1]{0}', space=sflag, size = 0x4, scoped, tag = 'scoped memory for tpu_custom_call.1']
    #allocation5 [shape = 'u8[4096]{0}', space=vmem, size = 0x1000, scoped, tag = 'output window, operand 0, single buffered']
    %12 = vsyncpa [#allocation4], 0
    %13 = vsyncpa [#allocation3], 0
    // Predicated region
    $region2: #{tpu_custom_call.1} parent=1 // pred_check
      _
    $region3: #{tpu_custom_call.1} parent=1 // pred_check_branch
      %15 = sbr.rel (0) target = $region5
    $region4: #{tpu_custom_call.1} parent=1 // pred_region
      %s17 = ssub.s32 16, 16
      %18 = vsyncadd [#allocation4], %s17
      %s20 = sshll.u32 %s0, 4
      %s21 = int_to_ptr.vmem [resolvable:$true] %s20
      %23 = dma.vmem_to_smem %s21, 16, [#allocation2], [#allocation4]
    $region5: #{tpu_custom_call.1} parent=1 // pred_fallthru
      _
    // Predicated region
    $region6: #{tpu_custom_call.1} parent=1 // pred_check
      _
    $region7: #{tpu_custom_call.1} parent=1 // pred_check_branch
      %25 = sbr.rel (0) target = $region9
    $region8: #{tpu_custom_call.1} parent=1 // pred_region
      _
    $region9: #{tpu_custom_call.1} parent=1 // pred_fallthru
      _
    // Predicated region
    $region10: #{tpu_custom_call.1} parent=1 // pred_check
      _
    $region11: #{tpu_custom_call.1} parent=1 // pred_check_branch
      %27 = sbr.rel (0) target = $region13
    $region12: #{tpu_custom_call.1} parent=1 // pred_region
      _
    $region13: #{tpu_custom_call.1} parent=1 // pred_fallthru
      _
    // Predicated region
    $region14: #{tpu_custom_call.1} parent=1 // pred_check
      _
    $region15: #{tpu_custom_call.1} parent=1 // pred_check_branch
      %29 = sbr.rel (0) target = $region17
    $region16: #{tpu_custom_call.1} parent=1 // pred_region
      _
    $region17: #{tpu_custom_call.1} parent=1 // pred_fallthru
      _
    // Predicated region
    $region18: #{tpu_custom_call.1} parent=1 // pred_check
      _
    $region19: #{tpu_custom_call.1} parent=1 // pred_check_branch
      %31 = sbr.rel (0) target = $region21
    $region20: #{tpu_custom_call.1} parent=1 // pred_region
      _
    $region21: #{tpu_custom_call.1} parent=1 // pred_fallthru
      _
    // Predicated region
    $region22: #{tpu_custom_call.1} parent=1 // pred_check
      _
    $region23: #{tpu_custom_call.1} parent=1 // pred_check_branch
      %33 = sbr.rel (0) target = $region25
    $region24: #{tpu_custom_call.1} parent=1 // pred_region
      _
    $region25: #{tpu_custom_call.1} parent=1 // pred_fallthru
      _
    // Predicated region
    $region26: #{tpu_custom_call.1} parent=1 // pred_check
      _
    $region27: #{tpu_custom_call.1} parent=1 // pred_check_branch
      %35 = sbr.rel (0) target = $region29
    $region28: #{tpu_custom_call.1} parent=1 // pred_region
      _
    $region29: #{tpu_custom_call.1} parent=1 // pred_fallthru
      _
    // Predicated region
    $region30: #{tpu_custom_call.1} parent=1 // pred_check
      _
    $region31: #{tpu_custom_call.1} parent=1 // pred_check_branch
      %37 = sbr.rel (0) target = $region33
    $region32: #{tpu_custom_call.1} parent=1 // pred_region
      %38 = dma.done [#allocation4], 16
    $region33: #{tpu_custom_call.1} parent=1 // pred_fallthru
      _
    %39 = sfence
    %v41 = vld [vmem:[%s1] sm:$0x3]
    %v42 = vld [vmem:[%s1 + $0x2] sm:$0x3]
    %v43 = vunpack.c.0.s8 %v41
    %v44 = vunpack.c.0.s8 %v42
    %v45 = vcvt.s32.f32 %v43
    %v46 = vcvt.s32.f32 %v44
    %s47 = sld [smem:[#allocation2 + $0x1]]
    %v48 = vstv %s47
    %v49 = vsub.f32 %v45, %v48
    %v50 = vsub.f32 %v46, %v48
    %s51 = sld [smem:[#allocation2]]
    %v52 = vstv %s51
    %v53 = vmul.f32 %v49, %v52
    %v54 = vmul.f32 %v50, %v52
    %v55 = vmul.f32 %v53, 0.5
    %v56 = vmul.f32 %v54, 0.5
    %v57 = vmul.f32 %v53, 0.044715
    %v58 = vmul.f32 %v54, 0.044715
    %v59 = vmul.f32 %v57, %v53
    %v60 = vmul.f32 %v58, %v54
    %v61 = vmul.f32 %v59, %v53
    %v62 = vmul.f32 %v60, %v54
    %v63 = vadd.f32 %v53, %v61
    %v64 = vadd.f32 %v54, %v62
    %v65 = vmul.f32 %v63, 0.7978846
    %v66 = vmul.f32 %v64, 0.7978846
    %v67 = vtanh.pop %v65
    %v68 = vtanh.pop %v66
    %v69 = vadd.f32 %v67, 1.0
    %v70 = vadd.f32 %v68, 1.0
    %v71 = vmul.f32 %v55, %v69
    %v72 = vmul.f32 %v56, %v70
    %v73 = vpack.c.bf16 %v72, %v71
    %v74 = vld [vmem:[%s2] sm:$0xf]
    %v75 = vld [vmem:[%s2 + $0x4] sm:$0xf]
    %v76 = vld [vmem:[%s2 + $0x8] sm:$0xf]
    %v77 = vld [vmem:[%s2 + $0xc] sm:$0xf]
    %v78 = vld [vmem:[%s2 + $0x10] sm:$0xf]
    %v79 = vld [vmem:[%s2 + $0x14] sm:$0xf]
    %v80 = vld [vmem:[%s2 + $0x18] sm:$0xf]
    %v81 = vld [vmem:[%s2 + $0x1c] sm:$0xf]
    %v82 = vld [vmem:[%s3] sm:$0x1]
    %v84 = vlaneseq
    %v85 = vshrl.u32 %v84, 7
    %v86 = vsub.s32 0, %v85
    %v87 = vrot.slane %v82, %v86
    %v97 = vunpack.c.l.b16 %v74
    %v98 = vunpack.c.l.b16 %v75
    %v99 = vunpack.c.l.b16 %v76
    %v100 = vunpack.c.l.b16 %v77
    %v101 = vunpack.c.l.b16 %v78
    %v102 = vunpack.c.l.b16 %v79
    %v103 = vunpack.c.l.b16 %v80
    %v104 = vunpack.c.l.b16 %v81
    %v105 = vpack.c.b16 %v98, %v97
    %v106 = vpack.c.b16 %v100, %v99
    %v107 = vpack.c.b16 %v102, %v101
    %v108 = vpack.c.b16 %v104, %v103
    %vm113 = vcmask 523264
    %v115 = vsel %vm113, %v73, 0
    %117 = vmatprep.subr.bf16.mxu0 0
    %118 = vmatpush1.bf16.msra.mxu0 0
    %119 = vmatprep.subr.bf16.mxu0 0
    %120 = vmatpush1.bf16.msra.mxu0 0
    %121 = vmatprep.subr.bf16.mxu0 0
    %122 = vmatpush1.bf16.msra.mxu0 0
    %123 = vmatprep.subr.bf16.mxu0 0
    %124 = vmatpush1.bf16.msra.mxu0 0
    %125 = vmatprep.subr.bf16.mxu0 0
    %126 = vmatpush1.bf16.msra.mxu0 %v108
    %127 = vmatprep.subr.bf16.mxu0 0
    %128 = vmatpush1.bf16.msra.mxu0 %v107
    %129 = vmatprep.subr.bf16.mxu0 0
    %130 = vmatpush1.bf16.msra.mxu0 %v106
    %131 = vmatprep.subr.bf16.mxu0 0
    %132 = vmatpush1.bf16.msra.mxu0 %v105
    %133 = vmatprep.subr.bf16.mxu0 0
    %134 = vmatpush2.bf16.msra.mxu0 0
    %135 = vmatprep.subr.bf16.mxu0 0
    %136 = vmatpush2.bf16.msra.mxu0 0
    %137 = vmatprep.subr.bf16.mxu0 0
    %138 = vmatpush2.bf16.msra.mxu0 0
    %139 = vmatprep.subr.bf16.mxu0 0
    %140 = vmatpush2.bf16.msra.mxu0 0
    %141 = vmatprep.subr.bf16.mxu0 0
    %142 = vmatpush2.bf16.msra.mxu0 0
    %143 = vmatprep.subr.bf16.mxu0 0
    %144 = vmatpush2.bf16.msra.mxu0 0
    %145 = vmatprep.subr.bf16.mxu0 0
    %146 = vmatpush2.bf16.msra.mxu0 0
    %147 = vmatprep.subr.bf16.mxu0 0
    %148 = vmatpush2.bf16.msra.mxu0 0
    %149 = vmatprep.mubr.bf16.mxu0 0
    %150 = vmatmul.mubr.bf16.gmra.mxu0 %v115
    %v151 = vpop.f32.mrf.mxu0
    %v152 = vadd.f32 %v87, %v151
    %v153 = vpop.f32.mrf.mxu0
    %v154 = vpop.f32.mrf.mxu0
    %v155 = vadd.f32 %v87, %v154
    %v156 = vpop.f32.mrf.mxu0
    %157 = vdwg.mxu0
    %v158 = vld [vmem:[%s4] sm:$0x3]
    %v159 = vld [vmem:[%s4 + $0x2] sm:$0x3]
    %v160 = vunpack.c.0.s8 %v158
    %v161 = vunpack.c.0.s8 %v159
    %v162 = vcvt.s32.f32 %v160
    %v163 = vcvt.s32.f32 %v161
    %s164 = sld [smem:[#allocation2 + $0x3]]
    %v165 = vstv %s164
    %v166 = vsub.f32 %v162, %v165
    %v167 = vsub.f32 %v163, %v165
    %s168 = sld [smem:[#allocation2 + $0x2]]
    %v169 = vstv %s168
    %v170 = vmul.f32 %v166, %v169
    %v171 = vmul.f32 %v167, %v169
    %v172 = vadd.f32 %v152, %v170
    %v173 = vadd.f32 %v155, %v171
    %vm174 = vcmask 261120
    %v175 = vsel %vm174, %v172, 0.0
    %176 = vadd.xlane.f32.xlu0 %v175
    %v177 = vpop.xlane.xlu0 %176
    %v178 = vsel %vm174, %v173, 0.0
    %179 = vadd.xlane.f32.xlu0 %v178
    %v180 = vpop.xlane.xlu0 %179
    %v181 = vrcp.pop 32.0
    %v182 = vmul.f32 %v177, %v181
    %v183 = vmul.f32 %v180, %v181
    %v184 = vsub.f32 %v172, %v182
    %v185 = vsub.f32 %v173, %v183
    %v186 = vmul.f32 %v184, %v184
    %v187 = vmul.f32 %v185, %v185
    %v188 = vsel %vm174, %v186, 0.0
    %189 = vadd.xlane.f32.xlu0 %v188
    %v190 = vpop.xlane.xlu0 %189
    %v191 = vsel %vm174, %v187, 0.0
    %192 = vadd.xlane.f32.xlu0 %v191
    %v193 = vpop.xlane.xlu0 %192
    %v194 = vmul.f32 %v190, %v181
    %v195 = vmul.f32 %v193, %v181
    %v196 = vadd.f32 %v194, 1e-12
    %v197 = vadd.f32 %v195, 1e-12
    %v198 = vrsqrt.pop %v196
    %v199 = vrsqrt.pop %v197
    %v200 = vmul.f32 %v184, %v198
    %v201 = vmul.f32 %v185, %v199
    %v202 = vld [vmem:[%s5] sm:$0x1]
    %v204 = vlaneseq
    %v205 = vshrl.u32 %v204, 7
    %v206 = vsub.s32 0, %v205
    %v207 = vrot.slane %v202, %v206
    %v209 = vmul.f32 %v200, %v207
    %v210 = vmul.f32 %v201, %v207
    %v211 = vld [vmem:[%s6] sm:$0x1]
    %v213 = vlaneseq
    %v214 = vshrl.u32 %v213, 7
    %v215 = vsub.s32 0, %v214
    %v216 = vrot.slane %v211, %v215
    %v218 = vadd.f32 %v209, %v216
    %v219 = vadd.f32 %v210, %v216
    %v220 = vpack.c.bf16 %v219, %v218
    %v222 = vunpack.c.l.b16 %v220
    %v223 = vunpack.c.h.b16 %v220
    %v224 = vpack.c.b16 %v222, %v222
    %v225 = vpack.c.b16 %v223, %v223
    %vm228 = vcmask 257024
    %229 = vst.msk [vmem:[#allocation5] sm:$0xf] %vm228, %v224
    %230 = vst.msk [vmem:[#allocation5 + $0x4] sm:$0xf] %vm228, %v225
    // Predicated region
    $region34: #{tpu_custom_call.1} parent=1 // pred_check
      _
    $region35: #{tpu_custom_call.1} parent=1 // pred_check_branch
      %232 = sbr.rel (0) target = $region37
    $region36: #{tpu_custom_call.1} parent=1 // pred_region
      %s234 = ssub.s32 128, 128
      %235 = vsyncadd [#allocation3], %s234
      %s236 = sshll.u32 [#allocation5], 4
      %s237 = int_to_ptr.vmem [resolvable:$true] %s236
      %242 = dma.vmem_to_hbm [thread:$0]  %s237, 128, %s7, [#allocation3], 64, 64, 4
    $region37: #{tpu_custom_call.1} parent=1 // pred_fallthru
      _
    // Predicated region
    $region38: #{tpu_custom_call.1} parent=1 // pred_check
      _
    $region39: #{tpu_custom_call.1} parent=1 // pred_check_branch
      %244 = sbr.rel (0) target = $region41
    $region40: #{tpu_custom_call.1} parent=1 // pred_region
      %245 = dma.done [#allocation3], 128
    $region41: #{tpu_custom_call.1} parent=1 // pred_fallthru
      _
    %246 = vsyncpa [#allocation3], 1
    %247 = vsyncpa [#allocation4], 1

</llo_original>
